<compile_context>
chip_gen: v7x
topology: tpu7x:2x2x1
jax: 0.10.0
libtpu: 0.0.40
codegen_flags: <defaults>
</compile_context>

<pallas_src>
import jax
import jax.numpy as jnp
from jax.experimental import pallas as pl
from jax.experimental.pallas import tpu as pltpu


def _round_up(x: int, m: int) -> int:
    return ((x + m - 1) // m) * m


def _cdiv(a: int, b: int) -> int:
    return (a + b - 1) // b


def supact_kernel(x_ref, c0_ref, c1_ref, bh_ref, o_ref):
    # o = (c0 + c1 * tanh(bh * x)) * x
    #   with c0 = 0.5*(1+gamma), c1 = 0.5*(1-gamma), bh = 0.5*beta
    x = x_ref[...].astype(jnp.float32)          # (tb, tf)
    t = jnp.tanh(bh_ref[...] * x)               # EUP; (1, tf) broadcasts over batch
    o_ref[...] = ((c0_ref[...] + c1_ref[...] * t) * x).astype(o_ref.dtype)


def supact(x, gamma, beta, *, target_block_elems=2 << 20, max_tf=2048, max_tb=2048):
    """x: (..., F); gamma, beta: (F,).  Works for any (ragged) shapes/dtypes."""
    orig_shape = x.shape
    F = orig_shape[-1]
    x2 = x.reshape(-1, F)
    B = x2.shape[0]

    # Hoist per-feature constants out of the kernel (tiny, f32).
    g = gamma.astype(jnp.float32)
    b = beta.astype(jnp.float32)
    c0 = (0.5 * (1.0 + g)).reshape(1, F)
    c1 = (0.5 * (1.0 - g)).reshape(1, F)
    bh = (0.5 * b).reshape(1, F)

    # Feature tile: lane-dense multiple of 128; ragged edge handled by cdiv grid.
    tf = min(_round_up(F, 128), max_tf)
    nf = _cdiv(F, tf)

    # Batch tile: multiple of the sublane tile (16 also covers bf16 packing),
    # sized so an x block is ~target_block_elems elements.
    sub = 16 if x2.dtype in (jnp.bfloat16, jnp.float16) else 8
    tb = max(sub, min(max_tb, (target_block_elems // tf) // sub * sub))
    tb = min(tb, _round_up(B, sub))
    nb = _cdiv(B, tb)
    # Guarantee >=2 blocks on a parallel axis when the batch is big enough,
    # so v7x's second TensorCore is not left idle for single-tile shapes.
    if nb == 1 and nf == 1 and B > 2 * sub:
        tb = _round_up(_cdiv(B, 2), sub)
        nb = _cdiv(B, tb)

    grid = (nf, nb)  # feature OUTER, batch INNER -> param blocks stay resident

    # TODO(synk): callers that can donate x could add input_output_aliases={0: 0}
    # to reuse the HBM buffer (footprint only; bandwidth is unchanged).
    out = pl.pallas_call(
        supact_kernel,
        out_shape=jax.ShapeDtypeStruct((B, F), x2.dtype),
        grid_spec=pltpu.PrefetchScalarGridSpec(
            num_scalar_prefetch=0,
            grid=grid,
            in_specs=[
                pl.BlockSpec((tb, tf), lambda jf, ib: (ib, jf)),   # x tile
                pl.BlockSpec((1, tf), lambda jf, ib: (0, jf)),     # c0 (resident per jf)
                pl.BlockSpec((1, tf), lambda jf, ib: (0, jf)),     # c1
                pl.BlockSpec((1, tf), lambda jf, ib: (0, jf)),     # bh
            ],
            out_specs=pl.BlockSpec((tb, tf), lambda jf, ib: (ib, jf)),
        ),
        compiler_params=pltpu.CompilerParams(
            dimension_semantics=("parallel", "parallel"),
            vmem_limit_bytes=48 << 20,   # safe on v5e/v6e (128 MiB) and v7x (64 MiB)
        ),
    )(x2, c0, c1, bh)

    return out.reshape(orig_shape)


def supact_ref(x, gamma, beta):
    inv = 1.0 / (1.0 + jnp.exp(-(beta * x)))
    return (gamma + inv * (1.0 - gamma)) * x


if __name__ == "__main__":
    key = jax.random.PRNGKey(0)

    # Case 1: deliberately ragged small shape (B % 8 != 0, F % 128 != 0) —
    # exercises the masked-edge-block path with no wrapper padding.
    B, F = 10, 96
    kx, kg, kb, k2 = jax.random.split(key, 4)
    x = jax.random.normal(kx, (B, F), dtype=jnp.float32)
    # Module init is ones/zeros; perturb deterministically for non-trivial math.
    gamma = jnp.ones((F,), jnp.float32) + 0.1 * jax.random.normal(kg, (F,), jnp.float32)
    beta = jnp.zeros((F,), jnp.float32) + 0.1 * jax.random.normal(kb, (F,), jnp.float32)

    out = jax.block_until_ready(supact(x, gamma, beta))
    ref = supact_ref(x, gamma.reshape(1, F), beta.reshape(1, F))
    assert out.shape == (B, F) and out.dtype == jnp.float32
    assert jnp.allclose(out, ref, atol=1e-5, rtol=1e-5), "mismatch vs reference (case 1)"

    # Case 2: multiple feature tiles (F > 2048, ragged) — exercises the
    # resident-parameter grid ordering and partial feature edge block.
    B2, F2 = 24, 2176
    kx2, kg2, kb2 = jax.random.split(k2, 3)
    x2 = jax.random.normal(kx2, (B2, F2), dtype=jnp.float32)
    gamma2 = jnp.ones((F2,), jnp.float32) + 0.1 * jax.random.normal(kg2, (F2,), jnp.float32)
    beta2 = jnp.zeros((F2,), jnp.float32) + 0.1 * jax.random.normal(kb2, (F2,), jnp.float32)

    out2 = jax.block_until_ready(supact(x2, gamma2, beta2))
    ref2 = supact_ref(x2, gamma2.reshape(1, F2), beta2.reshape(1, F2))
    assert out2.shape == (B2, F2) and out2.dtype == jnp.float32
    assert jnp.allclose(out2, ref2, atol=1e-5, rtol=1e-5), "mismatch vs reference (case 2)"

    print("KERNEL_OK")
</pallas_src>

<mosaic_0001>
module attributes {stable_mosaic.version = 11 : i64} {
  func.func @supact_kernel(%arg0: i32, %arg1: i32, %arg2: memref<16x128xf32, #tpu.memory_space<vmem>>, %arg3: memref<1x128xf32, #tpu.memory_space<vmem>>, %arg4: memref<1x128xf32, #tpu.memory_space<vmem>>, %arg5: memref<1x128xf32, #tpu.memory_space<vmem>>, %arg6: memref<16x128xf32, #tpu.memory_space<vmem>>) attributes {dimension_semantics = [#tpu.dimension_semantics<parallel>, #tpu.dimension_semantics<parallel>], iteration_bounds = array<i64: 1, 1>, scalar_prefetch = 0 : i64, scratch_operands = 0 : i64, tpu.core_type = #tpu.core_type<tc>, window_params = [{transform_indices = @transform_0, window_bounds = array<i64: 16, 128>}, {transform_indices = @transform_1, window_bounds = array<i64: 1, 128>}, {transform_indices = @transform_2, window_bounds = array<i64: 1, 128>}, {transform_indices = @transform_3, window_bounds = array<i64: 1, 128>}, {transform_indices = @transform_4, window_bounds = array<i64: 16, 128>}]} {
    %c0 = arith.constant 0 : index
    %c0_0 = arith.constant 0 : index
    %0 = vector.load %arg2[%c0, %c0_0] : memref<16x128xf32, #tpu.memory_space<vmem>>, vector<16x128xf32>
    %c0_1 = arith.constant 0 : index
    %c0_2 = arith.constant 0 : index
    %1 = vector.load %arg5[%c0_1, %c0_2] : memref<1x128xf32, #tpu.memory_space<vmem>>, vector<1x128xf32>
    %2 = vector.broadcast %1 : vector<1x128xf32> to vector<16x128xf32>
    %3 = arith.mulf %2, %0 : vector<16x128xf32>
    %4 = math.tanh %3 : vector<16x128xf32>
    %c0_3 = arith.constant 0 : index
    %c0_4 = arith.constant 0 : index
    %5 = vector.load %arg3[%c0_3, %c0_4] : memref<1x128xf32, #tpu.memory_space<vmem>>, vector<1x128xf32>
    %c0_5 = arith.constant 0 : index
    %c0_6 = arith.constant 0 : index
    %6 = vector.load %arg4[%c0_5, %c0_6] : memref<1x128xf32, #tpu.memory_space<vmem>>, vector<1x128xf32>
    %7 = vector.broadcast %6 : vector<1x128xf32> to vector<16x128xf32>
    %8 = arith.mulf %7, %4 : vector<16x128xf32>
    %9 = vector.broadcast %5 : vector<1x128xf32> to vector<16x128xf32>
    %10 = arith.addf %9, %8 : vector<16x128xf32>
    %11 = arith.mulf %10, %0 : vector<16x128xf32>
    %c0_7 = arith.constant 0 : index
    %c0_8 = arith.constant 0 : index
    %12 = vector.load %arg6[%c0_7, %c0_8] : memref<16x128xf32, #tpu.memory_space<vmem>>, vector<16x128xf32>
    tpu.vector_store %arg6[%c0_7, %c0_8], %11 {strides = array<i32>} : memref<16x128xf32, #tpu.memory_space<vmem>>, vector<16x128xf32>,
    return
  }
  func.func @transform_0(%arg0: i32, %arg1: i32) -> (i32, i32) {
    %c0_i32 = arith.constant 0 : i32
    return %arg1, %arg0 : i32, i32
  }
  func.func @transform_1(%arg0: i32, %arg1: i32) -> (i32, i32) {
    %c0_i32 = arith.constant 0 : i32
    %c0_i32_0 = arith.constant 0 : i32
    return %c0_i32, %arg0 : i32, i32
  }
  func.func @transform_2(%arg0: i32, %arg1: i32) -> (i32, i32) {
    %c0_i32 = arith.constant 0 : i32
    %c0_i32_0 = arith.constant 0 : i32
    return %c0_i32, %arg0 : i32, i32
  }
  func.func @transform_3(%arg0: i32, %arg1: i32) -> (i32, i32) {
    %c0_i32 = arith.constant 0 : i32
    %c0_i32_0 = arith.constant 0 : i32
    return %c0_i32, %arg0 : i32, i32
  }
  func.func @transform_4(%arg0: i32, %arg1: i32) -> (i32, i32) {
    %c0_i32 = arith.constant 0 : i32
    return %arg1, %arg0 : i32, i32
  }
}

</mosaic_0001>

<llo_original>
// kernel: tpu_custom_call.1
$region0: #{tpu_custom_call.1}
  #allocation0 [shape = 'u32[]', space=smem, size = 0x4, offset = 0x4, fixed_abs, tag = 'smem constant byte address 0x4 - core index']
  #allocation1 [shape = 'u32[144,128]{1,0:T(1,128)}', space=vmem, size = 0x12000, scoped, tag = 'internal scratch']
  %s0 = inlined_call_operand.hbm [shape: f32[10,96], index: 0, kind: input, shape index: {}]
  %s1 = inlined_call_operand.vmem [shape: f32[1,96], index: 1, kind: input, shape index: {}]
  %s2 = inlined_call_operand.vmem [shape: f32[1,96], index: 2, kind: input, shape index: {}]
  %s3 = inlined_call_operand.vmem [shape: f32[1,96], index: 3, kind: input, shape index: {}]
  %s4 = inlined_call_operand.hbm [shape: f32[10,96], index: 4, kind: output, shape index: {}]
  %s5 = sld [smem:[#allocation0]]
  $region30: #{tpu_custom_call.1} parent=0
    _
  %s7 = ssub.s32 1, %s5
  %s8 = scalar_select 0, %s7, %s5
  $region1: #{tpu_custom_call.1} parent=0
    #allocation2 [shape = 'u8[8192]{0}', space=vmem, size = 0x2000, scoped, tag = 'input window, operand 0, single buffered']
    #allocation3 [shape = 's32[1]{0}', space=sflag, size = 0x4, scoped, tag = 'scoped memory for tpu_custom_call.1']
    #allocation4 [shape = 's32[1]{0}', space=sflag, size = 0x4, scoped, tag = 'scoped memory for tpu_custom_call.1']
    #allocation5 [shape = 'u8[8192]{0}', space=vmem, size = 0x2000, scoped, tag = 'output window, operand 0, single buffered']
    %9 = vsyncpa [#allocation3], 0
    %10 = vsyncpa [#allocation4], 0
    // Predicated region
    $region2: #{tpu_custom_call.1} parent=1 // pred_check
      _
    $region3: #{tpu_custom_call.1} parent=1 // pred_check_branch
      %12 = sbr.rel (0) target = $region5
    $region4: #{tpu_custom_call.1} parent=1 // pred_region
      %s14 = ssub.s32 256, 256
      %15 = vsyncadd [#allocation3], %s14
      %s16 = sshll.u32 [#allocation2], 4
      %s17 = int_to_ptr.vmem [resolvable:$true] %s16
      %22 = dma.hbm_to_vmem [thread:$0]  %s0, 256, %s17, [#allocation3], 128, 128, 8
    $region5: #{tpu_custom_call.1} parent=1 // pred_fallthru
      _
    // Predicated region
    $region6: #{tpu_custom_call.1} parent=1 // pred_check
      _
    $region7: #{tpu_custom_call.1} parent=1 // pred_check_branch
      %24 = sbr.rel (0) target = $region9
    $region8: #{tpu_custom_call.1} parent=1 // pred_region
      _
    $region9: #{tpu_custom_call.1} parent=1 // pred_fallthru
      _
    // Predicated region
    $region10: #{tpu_custom_call.1} parent=1 // pred_check
      _
    $region11: #{tpu_custom_call.1} parent=1 // pred_check_branch
      %26 = sbr.rel (0) target = $region13
    $region12: #{tpu_custom_call.1} parent=1 // pred_region
      _
    $region13: #{tpu_custom_call.1} parent=1 // pred_fallthru
      _
    // Predicated region
    $region14: #{tpu_custom_call.1} parent=1 // pred_check
      _
    $region15: #{tpu_custom_call.1} parent=1 // pred_check_branch
      %28 = sbr.rel (0) target = $region17
    $region16: #{tpu_custom_call.1} parent=1 // pred_region
      _
    $region17: #{tpu_custom_call.1} parent=1 // pred_fallthru
      _
    // Predicated region
    $region18: #{tpu_custom_call.1} parent=1 // pred_check
      _
    $region19: #{tpu_custom_call.1} parent=1 // pred_check_branch
      %30 = sbr.rel (0) target = $region21
    $region20: #{tpu_custom_call.1} parent=1 // pred_region
      %31 = dma.done [#allocation3], 256
    $region21: #{tpu_custom_call.1} parent=1 // pred_fallthru
      _
    %v32 = vld [vmem:[#allocation2] sm:$0xff]
    %v33 = vld [vmem:[#allocation2 + $0x8] sm:$0xff]
    %v34 = vld [vmem:[%s3] sm:$0x1]
    %v36 = vlaneseq
    %v37 = vshrl.u32 %v36, 7
    %v38 = vsub.s32 0, %v37
    %v39 = vrot.slane %v34, %v38
    %v41 = vmul.f32 %v39, %v32
    %v42 = vmul.f32 %v39, %v33
    %v43 = vtanh.pop %v41
    %v44 = vtanh.pop %v42
    %v45 = vld [vmem:[%s1] sm:$0x1]
    %v46 = vld [vmem:[%s2] sm:$0x1]
    %v48 = vlaneseq
    %v49 = vshrl.u32 %v48, 7
    %v50 = vsub.s32 0, %v49
    %v51 = vrot.slane %v46, %v50
    %v53 = vmul.f32 %v51, %v43
    %v54 = vmul.f32 %v51, %v44
    %v56 = vlaneseq
    %v57 = vshrl.u32 %v56, 7
    %v58 = vsub.s32 0, %v57
    %v59 = vrot.slane %v45, %v58
    %v61 = vadd.f32 %v59, %v53
    %v62 = vadd.f32 %v59, %v54
    %v63 = vmul.f32 %v61, %v32
    %v64 = vmul.f32 %v62, %v33
    %65 = vst [vmem:[#allocation5] sm:$0xff] %v63
    %66 = vst [vmem:[#allocation5 + $0x8] sm:$0xff] %v64
    // Predicated region
    $region22: #{tpu_custom_call.1} parent=1 // pred_check
      _
    $region23: #{tpu_custom_call.1} parent=1 // pred_check_branch
      %68 = sbr.rel (0) target = $region25
    $region24: #{tpu_custom_call.1} parent=1 // pred_region
      %s70 = ssub.s32 256, 256
      %71 = vsyncadd [#allocation4], %s70
      %s72 = sshll.u32 [#allocation5], 4
      %s73 = int_to_ptr.vmem [resolvable:$true] %s72
      %78 = dma.vmem_to_hbm [thread:$0]  %s73, 256, %s4, [#allocation4], 128, 128, 8
    $region25: #{tpu_custom_call.1} parent=1 // pred_fallthru
      _
    // Predicated region
    $region26: #{tpu_custom_call.1} parent=1 // pred_check
      _
    $region27: #{tpu_custom_call.1} parent=1 // pred_check_branch
      %80 = sbr.rel (0) target = $region29
    $region28: #{tpu_custom_call.1} parent=1 // pred_region
      %81 = dma.done [#allocation4], 256
    $region29: #{tpu_custom_call.1} parent=1 // pred_fallthru
      _
    %82 = vsyncpa [#allocation3], 1
    %83 = vsyncpa [#allocation4], 1

</llo_original>
